<compile_context>
chip_gen: v6e
topology: v6e:2x2x1
jax: 0.10.0
libtpu: 0.0.40
codegen_flags: <defaults>
</compile_context>

<pallas_src>
import functools
import math

import jax
import jax.numpy as jnp
from jax.experimental import pallas as pl
from jax.experimental.pallas import tpu as pltpu


# ----------------------------------------------------------------------------
# One-time setup (analogue of the torch register_buffer)
# ----------------------------------------------------------------------------
def make_positional_encoding_table(d_model: int, max_len: int = 5000) -> jnp.ndarray:
    """Sinusoidal PE table, shape (max_len, d_model), float32 (== torch pe[:, 0, :])."""
    assert d_model % 2 == 0, "d_model must be even (matches the torch module)"
    position = jnp.arange(0, max_len, dtype=jnp.float32)[:, None]            # (max_len, 1)
    div_term = jnp.exp(
        jnp.arange(0, d_model, 2, dtype=jnp.float32) * (-math.log(10000.0) / d_model)
    )                                                                         # (d_model/2,)
    angles = position * div_term                                              # (max_len, d_model/2)
    # even columns = sin, odd columns = cos (interleaved), exactly as in torch
    return jnp.stack([jnp.sin(angles), jnp.cos(angles)], axis=-1).reshape(max_len, d_model)


def prepare_positional_encoding(d_model: int,
                                batch: int,
                                dtype=jnp.float32,
                                max_len: int = 5000,
                                lane_fold: bool | None = None) -> jnp.ndarray:
    """Build the PE buffer once, already in the activation dtype.

    lane_fold=True  -> shape (max_len, batch*d_model): batch folded into the lane
                       axis so kernel tiles are lane-dense even for small d_model
                       (used when d_model is not a multiple of 128).
    lane_fold=False -> shape (max_len, 1, d_model): d_model stays on the lane
                       axis, broadcast over batch happens in-kernel.
    """
    if lane_fold is None:
        lane_fold = (d_model % 128) != 0
    pe = make_positional_encoding_table(d_model, max_len).astype(dtype)
    if lane_fold:
        # One-time setup cost; small for the small-d_model regime this path targets.
        return jnp.tile(pe, (1, batch))            # (max_len, batch*d_model)
    return pe[:, None, :]                          # (max_len, 1, d_model)


# ----------------------------------------------------------------------------
# Kernel
# ----------------------------------------------------------------------------
def _pe_add_kernel(x_ref, pe_ref, o_ref, *, scale):
    x = x_ref[...]
    if scale is not None:  # fusion hook (e.g. sqrt(d_model) embedding scale); None == pure add
        x = x * jnp.asarray(scale, dtype=x.dtype)
    # Folded path: shapes match exactly.  3-D path: pe block is (ts, 1, D) and
    # broadcasts implicitly over the batch (sublane) axis.
    o_ref[...] = x + pe_ref[...]


def _choose_block_rows(S: int, row_bytes: int, itemsize: int,
                       target_block_bytes: int = 2 << 20) -> int:
    """Pick a sequence tile: ~target bytes per x block, multiple of 8 (16 for bf16)."""
    align = 16 if itemsize == 2 else 8
    rows = target_block_bytes // max(row_bytes, 1)
    rows = (rows // align) * align
    rows = max(rows, align)
    if rows >= S:
        return S            # full-extent block (always legal, even if S % 8 != 0)
    return rows


# ----------------------------------------------------------------------------
# Forward
# ----------------------------------------------------------------------------
def positional_encoding_forward(x: jnp.ndarray,
                                pe_buf: jnp.ndarray,
                                *,
                                block_rows: int | None = None,
                                scale: float | None = None,
                                target_block_bytes: int = 2 << 20,
                                vmem_limit_bytes: int | None = None) -> jnp.ndarray:
    """x: (S, B, D); pe_buf: output of prepare_positional_encoding. Returns x + pe[:S]."""
    S, B, D = x.shape
    folded = (pe_buf.ndim == 2)
    assert S <= pe_buf.shape[0], "sequence longer than max_len"
    if folded:
        assert pe_buf.shape[1] == B * D, "pe buffer prepared for different batch/d_model"
    else:
        assert pe_buf.shape[1:] == (1, D), "pe buffer prepared for different d_model"

    itemsize = x.dtype.itemsize
    row_bytes = B * D * itemsize
    ts = block_rows if block_rows is not None else _choose_block_rows(
        S, row_bytes, itemsize, target_block_bytes)
    grid = (pl.cdiv(S, ts),)

    # Explicit scoped-VMEM budget: double-buffered x + out + pe blocks, with headroom.
    if vmem_limit_bytes is None:
        pe_row_bytes = pe_buf.shape[-1] * pe_buf.dtype.itemsize
        needed = 2 * (2 * ts * row_bytes + ts * pe_row_bytes)
        vmem_limit_bytes = int(max(32 << 20, min(2 * needed, 64 << 20)))

    cparams = pltpu.CompilerParams(
        dimension_semantics=("parallel",),      # shards seq tiles across v7x's 2 TCs
        vmem_limit_bytes=vmem_limit_bytes,
    )
    kernel = functools.partial(_pe_add_kernel, scale=scale)

    if folded:
        # Lane-dense layout: fold batch into the lane axis (contiguous reshape, free).
        xf = x.reshape(S, B * D)
        out = pl.pallas_call(
            kernel,
            out_shape=jax.ShapeDtypeStruct((S, B * D), x.dtype),
            grid=grid,
            in_specs=[
                pl.BlockSpec((ts, B * D), lambda i: (i, 0)),   # x tile
                pl.BlockSpec((ts, B * D), lambda i: (i, 0)),   # pe tile (same rows)
            ],
            out_specs=pl.BlockSpec((ts, B * D), lambda i: (i, 0)),
            compiler_params=cparams,
        )(xf, pe_buf)
        return out.reshape(S, B, D)

    # d_model already lane-dense (multiple of 128): keep 3-D blocks, broadcast over
    # batch in-kernel so pe HBM traffic is only ts*D per tile (not ts*B*D).
    return pl.pallas_call(
        kernel,
        out_shape=jax.ShapeDtypeStruct((S, B, D), x.dtype),
        grid=grid,
        in_specs=[
            pl.BlockSpec((ts, B, D), lambda i: (i, 0, 0)),
            pl.BlockSpec((ts, 1, D), lambda i: (i, 0, 0)),
        ],
        out_specs=pl.BlockSpec((ts, B, D), lambda i: (i, 0, 0)),
        compiler_params=cparams,
    )(x, pe_buf)


# ----------------------------------------------------------------------------
# Demo / correctness check
# ----------------------------------------------------------------------------
if __name__ == "__main__":
    # --- Test 1: small d_model (folded / lane-dense path), single tile -------
    S, B, D = 8, 2, 32  # seq_len, batch, d_model (small, matches module usage)
    key = jax.random.PRNGKey(0)
    x = jax.random.normal(key, (S, B, D), dtype=jnp.float32)

    pe_table = make_positional_encoding_table(D, max_len=5000)          # (5000, 32) f32
    pe_buf = prepare_positional_encoding(D, B, dtype=x.dtype)           # folded: (5000, 64)

    out = jax.block_until_ready(positional_encoding_forward(x, pe_buf))
    ref = x + pe_table[:S].astype(x.dtype)[:, None, :]
    assert out.shape == (S, B, D)
    assert jnp.allclose(out, ref, atol=1e-6), "mismatch vs reference (folded path)"

    # --- Test 2: multi-tile grid with a partial last block (real S-tiling) ---
    S2 = 36
    x2 = jax.random.normal(jax.random.PRNGKey(1), (S2, B, D), dtype=jnp.float32)
    out2 = jax.block_until_ready(
        positional_encoding_forward(x2, pe_buf, block_rows=8))
    ref2 = x2 + pe_table[:S2].astype(x2.dtype)[:, None, :]
    assert jnp.allclose(out2, ref2, atol=1e-6), "mismatch vs reference (tiled path)"

    # --- Test 3: 128-aligned d_model (3-D path, pe broadcast over batch) -----
    S3, B3, D3 = 16, 2, 128
    x3 = jax.random.normal(jax.random.PRNGKey(2), (S3, B3, D3), dtype=jnp.float32)
    pe_table3 = make_positional_encoding_table(D3, max_len=5000)
    pe_buf3 = prepare_positional_encoding(D3, B3, dtype=x3.dtype)       # (5000, 1, 128)
    out3 = jax.block_until_ready(positional_encoding_forward(x3, pe_buf3))
    ref3 = x3 + pe_table3[:S3].astype(x3.dtype)[:, None, :]
    assert jnp.allclose(out3, ref3, atol=1e-6), "mismatch vs reference (3-D path)"

    print("KERNEL_OK")
</pallas_src>

<mosaic_0001>
module attributes {stable_mosaic.version = 11 : i64} {
  func.func @_pe_add_kernel(%arg0: i32, %arg1: memref<8x64xf32, #tpu.memory_space<vmem>>, %arg2: memref<8x64xf32, #tpu.memory_space<vmem>>, %arg3: memref<8x64xf32, #tpu.memory_space<vmem>>) attributes {dimension_semantics = [#tpu.dimension_semantics<parallel>], iteration_bounds = array<i64: 1>, scalar_prefetch = 0 : i64, scratch_operands = 0 : i64, tpu.core_type = #tpu.core_type<tc>, window_params = [{transform_indices = @transform_0, window_bounds = array<i64: 8, 64>}, {transform_indices = @transform_1, window_bounds = array<i64: 8, 64>}, {transform_indices = @transform_2, window_bounds = array<i64: 8, 64>}]} {
    %c0 = arith.constant 0 : index
    %c0_0 = arith.constant 0 : index
    %0 = vector.load %arg1[%c0, %c0_0] : memref<8x64xf32, #tpu.memory_space<vmem>>, vector<8x64xf32>
    %c0_1 = arith.constant 0 : index
    %c0_2 = arith.constant 0 : index
    %1 = vector.load %arg2[%c0_1, %c0_2] : memref<8x64xf32, #tpu.memory_space<vmem>>, vector<8x64xf32>
    %2 = arith.addf %0, %1 : vector<8x64xf32>
    %c0_3 = arith.constant 0 : index
    %c0_4 = arith.constant 0 : index
    %3 = vector.load %arg3[%c0_3, %c0_4] : memref<8x64xf32, #tpu.memory_space<vmem>>, vector<8x64xf32>
    tpu.vector_store %arg3[%c0_3, %c0_4], %2 {strides = array<i32>} : memref<8x64xf32, #tpu.memory_space<vmem>>, vector<8x64xf32>,
    return
  }
  func.func @transform_0(%arg0: i32) -> (i32, i32) {
    %c0_i32 = arith.constant 0 : i32
    %c0_i32_0 = arith.constant 0 : i32
    return %arg0, %c0_i32 : i32, i32
  }
  func.func @transform_1(%arg0: i32) -> (i32, i32) {
    %c0_i32 = arith.constant 0 : i32
    %c0_i32_0 = arith.constant 0 : i32
    return %arg0, %c0_i32 : i32, i32
  }
  func.func @transform_2(%arg0: i32) -> (i32, i32) {
    %c0_i32 = arith.constant 0 : i32
    %c0_i32_0 = arith.constant 0 : i32
    return %arg0, %c0_i32 : i32, i32
  }
}

</mosaic_0001>

<llo_original>
// kernel: tpu_custom_call.1
$region0: #{tpu_custom_call.1}
  #allocation0 [shape = 'u32[]', space=smem, size = 0x4, offset = 0x4, fixed_abs, tag = 'smem constant byte address 0x4 - core index']
  #allocation1 [shape = 'u32[144,128]{1,0:T(1,128)}', space=vmem, size = 0x12000, scoped, tag = 'internal scratch']
  %s0 = inlined_call_operand.vmem [shape: f32[8,64], index: 0, kind: input, shape index: {}]
  %s1 = inlined_call_operand.vmem [shape: f32[5000,64], index: 1, kind: input, shape index: {}]
  %s2 = inlined_call_operand.hbm [shape: f32[8,64], index: 2, kind: output, shape index: {}]
  %s3 = sld [smem:[#allocation0]]
  $region18: #{tpu_custom_call.1} parent=0
    _
  %s5 = ssub.s32 1, %s3
  %s6 = scalar_select 0, %s5, %s3
  $region1: #{tpu_custom_call.1} parent=0
    #allocation2 [shape = 'u8[4096]{0}', space=vmem, size = 0x1000, scoped, tag = 'output window, operand 0, single buffered']
    #allocation3 [shape = 's32[1]{0}', space=sflag, size = 0x4, scoped, tag = 'scoped memory for tpu_custom_call.1']
    %7 = vsyncpa [#allocation3], 0
    // Predicated region
    $region2: #{tpu_custom_call.1} parent=1 // pred_check
      _
    $region3: #{tpu_custom_call.1} parent=1 // pred_check_branch
      %9 = sbr.rel (0) target = $region5
    $region4: #{tpu_custom_call.1} parent=1 // pred_region
      _
    $region5: #{tpu_custom_call.1} parent=1 // pred_fallthru
      _
    // Predicated region
    $region6: #{tpu_custom_call.1} parent=1 // pred_check
      _
    $region7: #{tpu_custom_call.1} parent=1 // pred_check_branch
      %11 = sbr.rel (0) target = $region9
    $region8: #{tpu_custom_call.1} parent=1 // pred_region
      _
    $region9: #{tpu_custom_call.1} parent=1 // pred_fallthru
      _
    %v12 = vld [vmem:[%s0] sm:$0xff]
    %v13 = vld [vmem:[%s1] sm:$0xff]
    %v14 = vadd.f32 %v12, %v13
    %vm15 = vcmask 523264
    %16 = vst.msk [vmem:[#allocation2] sm:$0xff] %vm15, %v14
    // Predicated region
    $region10: #{tpu_custom_call.1} parent=1 // pred_check
      _
    $region11: #{tpu_custom_call.1} parent=1 // pred_check_branch
      %18 = sbr.rel (0) target = $region13
    $region12: #{tpu_custom_call.1} parent=1 // pred_region
      %s20 = ssub.s32 128, 128
      %21 = vsyncadd [#allocation3], %s20
      %s23 = sshll.u32 [#allocation2], 4
      %s24 = int_to_ptr.vmem [resolvable:$true] %s23
      %26 = dma.vmem_to_hbm [thread:$0]  %s24, 128, %s2, [#allocation3]
    $region13: #{tpu_custom_call.1} parent=1 // pred_fallthru
      _
    // Predicated region
    $region14: #{tpu_custom_call.1} parent=1 // pred_check
      _
    $region15: #{tpu_custom_call.1} parent=1 // pred_check_branch
      %28 = sbr.rel (0) target = $region17
    $region16: #{tpu_custom_call.1} parent=1 // pred_region
      %29 = dma.done [#allocation3], 128
    $region17: #{tpu_custom_call.1} parent=1 // pred_fallthru
      _
    %30 = vsyncpa [#allocation3], 1

</llo_original>
